<compile_context>
chip_gen: v7x
topology: tpu7x:2x2x1
jax: 0.10.0
libtpu: 0.0.40
codegen_flags: <defaults>
</compile_context>

<pallas_src>
import jax
import jax.numpy as jnp
from jax.experimental import pallas as pl
from jax.experimental.pallas import tpu as pltpu


def _affine_kernel(x_ref, scale_ref, shift_ref, y_ref):
    """One (TILE_B, TILE_D) tile of the folded sequential affine flow."""
    # Params are pre-cast to x.dtype wrapper-side, so the FMA runs in the
    # input dtype (bf16 stays bf16 on v6e/v7x VPUs; f32 stays f32).
    y_ref[...] = (x_ref[...] * scale_ref[...] + shift_ref[...]).astype(y_ref.dtype)


_LANE = 128
_SUBLANE = 8
# Per-tile byte cap for the x / y buffers.  With BlockSpec double buffering the
# working set is 2 x-bufs + 2 y-bufs + 2 tiny param bufs <= ~17 MiB, safely
# inside the 32 MiB scoped-VMEM limit below on every generation (incl. v7x,
# whose per-TC VMEM is only 64 MiB).
_MAX_TILE_BYTES = 4 * 1024 * 1024
# Below this total input size, plain XLA beats the pallas_call launch overhead.
_TINY_BYTES = 128 * 1024


def _choose_tiles(B, D_pad, itemsize):
    """Pick lane-dense (TILE_B, TILE_D) under the VMEM budget, >= 2 grid blocks."""
    tile_d = D_pad if D_pad <= 2048 else 2048
    max_rows = max(_SUBLANE,
                   (_MAX_TILE_BYTES // (tile_d * itemsize)) // _SUBLANE * _SUBLANE)
    row_cap = min(max_rows, 1024)
    tile_b = B if B <= row_cap else row_cap
    # v7x has 2 TensorCores sharing HBM: ensure the parallel grid has >= 2
    # blocks so both stream.  Costs one extra grid step (~0.35 us) on v5e/v6e.
    if pl.cdiv(B, tile_b) * pl.cdiv(D_pad, tile_d) < 2:
        if tile_b >= 16 and tile_b % 16 == 0:
            tile_b //= 2
        elif tile_d >= 256 and tile_d % 256 == 0:
            tile_d //= 2
    return tile_b, tile_d


def sequential_flow_forward(x, log_scales, shifts, logdetJ=False):
    """SequentialFlow.forward(x, logdetJ) for L stacked elementwise-affine flows.

    x:          (B, D)
    log_scales: (L, D)  per-layer log-scale parameters
    shifts:     (L, D)  per-layer shift parameters
    """
    B, D = x.shape
    s = log_scales.astype(jnp.float32)
    t = shifts.astype(jnp.float32)

    # Fold the composition  x -> (((x*e^s0 + t0)*e^s1 + t1) ... ) into a single
    # effective affine (exact math; only fp32 associativity differs slightly).
    csum_from_l = jnp.cumsum(s[::-1], axis=0)[::-1]          # sum_{m >= l} s_m, (L, D)
    suffix_excl = csum_from_l - s                            # sum_{m >  l} s_m, (L, D)
    eff_scale = jnp.exp(csum_from_l[0])                      # (D,)
    eff_shift = jnp.sum(t * jnp.exp(suffix_excl), axis=0)    # (D,)

    itemsize = jnp.dtype(x.dtype).itemsize

    if B * D * itemsize <= _TINY_BYTES:
        # Tiny-input fast path: fused XLA elementwise is strictly faster than a
        # single-block pallas_call's fixed launch / DMA-setup cost.
        y = (x.astype(jnp.float32) * eff_scale + eff_shift).astype(x.dtype)
    else:
        # Pad features to a lane multiple so every output block is lane-dense
        # (unmasked vst); slice the padding back off afterwards.
        D_pad = pl.cdiv(D, _LANE) * _LANE
        if D_pad != D:
            x_in = jnp.pad(x, ((0, 0), (0, D_pad - D)))
            scale_in = jnp.pad(eff_scale, (0, D_pad - D), constant_values=1.0)
            shift_in = jnp.pad(eff_shift, (0, D_pad - D))
        else:
            x_in, scale_in, shift_in = x, eff_scale, eff_shift

        # Keep params in the input dtype so the kernel is cast-free.
        scale_in = scale_in.astype(x.dtype)[None, :]          # (1, D_pad)
        shift_in = shift_in.astype(x.dtype)[None, :]          # (1, D_pad)

        TILE_B, TILE_D = _choose_tiles(B, D_pad, itemsize)
        n_b = pl.cdiv(B, TILE_B)
        n_d = pl.cdiv(D_pad, TILE_D)

        cost = pl.CostEstimate(
            flops=2 * B * D_pad,
            transcendentals=0,
            bytes_accessed=int(2 * B * D_pad * itemsize + 2 * D_pad * itemsize),
        )

        # Grid = (feature tiles, batch tiles): batch is innermost, so the param
        # blocks' index (0, j) is constant along the inner axis and they stay
        # VMEM-resident instead of being re-DMA'd every grid step.
        y_pad = pl.pallas_call(
            _affine_kernel,
            grid=(n_d, n_b),
            in_specs=[
                pl.BlockSpec((TILE_B, TILE_D), lambda j, i: (i, j)),   # x tile
                pl.BlockSpec((1, TILE_D), lambda j, i: (0, j)),        # eff_scale
                pl.BlockSpec((1, TILE_D), lambda j, i: (0, j)),        # eff_shift
            ],
            out_specs=pl.BlockSpec((TILE_B, TILE_D), lambda j, i: (i, j)),
            out_shape=jax.ShapeDtypeStruct((B, D_pad), x.dtype),
            compiler_params=pltpu.CompilerParams(
                dimension_semantics=("parallel", "parallel"),
                vmem_limit_bytes=32 * 1024 * 1024,
            ),
            cost_estimate=cost,
        )(x_in, scale_in, shift_in)
        y = y_pad[:, :D] if D_pad != D else y_pad

    if logdetJ:
        # log|det J| of an elementwise-affine composition is data-independent:
        # the same scalar sum of all log-scales for every sample.
        # TODO(synk): only valid because every flow in flow_list is elementwise
        # affine; a non-affine flow would need its own per-sample reduction.
        logdet = jnp.full((B,), jnp.sum(s), dtype=jnp.float32)
        return y, logdet
    return y


def _reference_forward(x, log_scales, shifts):
    """Pure-JAX reference: literal SequentialFlow composition, layer by layer."""
    ld = jnp.zeros((x.shape[0],), jnp.float32)
    for l in range(log_scales.shape[0]):
        x = x * jnp.exp(log_scales[l]) + shifts[l]
        ld = ld + jnp.sum(log_scales[l])
    return x, ld


if __name__ == "__main__":
    key = jax.random.PRNGKey(0)

    # --- Case 1: tiny input (8, 128) -> exercises the fused-XLA fast path ---
    B1, D1, L1 = 8, 128, 4
    k1, k2, k3, key = jax.random.split(key, 4)
    x1 = jax.random.normal(k1, (B1, D1), dtype=jnp.float32)
    s1 = 0.1 * jax.random.normal(k2, (L1, D1), dtype=jnp.float32)
    t1 = 0.1 * jax.random.normal(k3, (L1, D1), dtype=jnp.float32)

    y1, ld1 = sequential_flow_forward(x1, s1, t1, logdetJ=True)
    y1 = jax.block_until_ready(y1)
    ld1 = jax.block_until_ready(ld1)
    y1_only = jax.block_until_ready(sequential_flow_forward(x1, s1, t1, logdetJ=False))
    y1_ref, ld1_ref = _reference_forward(x1, s1, t1)
    assert jnp.allclose(y1, y1_ref, atol=1e-5, rtol=1e-5)
    assert jnp.allclose(y1_only, y1_ref, atol=1e-5, rtol=1e-5)
    assert jnp.allclose(ld1, ld1_ref, atol=1e-4, rtol=1e-5)

    # --- Case 2: (128, 300) -> Pallas path with feature padding (300 -> 384)
    #     and a (1, 2) parallel grid so both v7x TensorCores get a block. ---
    B2, D2, L2 = 128, 300, 3
    k1, k2, k3, key = jax.random.split(key, 4)
    x2 = jax.random.normal(k1, (B2, D2), dtype=jnp.float32)
    s2 = 0.1 * jax.random.normal(k2, (L2, D2), dtype=jnp.float32)
    t2 = 0.1 * jax.random.normal(k3, (L2, D2), dtype=jnp.float32)

    y2, ld2 = sequential_flow_forward(x2, s2, t2, logdetJ=True)
    y2 = jax.block_until_ready(y2)
    ld2 = jax.block_until_ready(ld2)
    y2_only = jax.block_until_ready(sequential_flow_forward(x2, s2, t2, logdetJ=False))
    y2_ref, ld2_ref = _reference_forward(x2, s2, t2)
    assert jnp.allclose(y2, y2_ref, atol=1e-5, rtol=1e-5)
    assert jnp.allclose(y2_only, y2_ref, atol=1e-5, rtol=1e-5)
    assert jnp.allclose(ld2, ld2_ref, atol=1e-4, rtol=1e-5)

    print("KERNEL_OK")
</pallas_src>

<mosaic_0001>
module attributes {stable_mosaic.version = 11 : i64} {
  func.func @_affine_kernel(%arg0: i32, %arg1: i32, %arg2: memref<64x384xf32, #tpu.memory_space<vmem>>, %arg3: memref<1x384xf32, #tpu.memory_space<vmem>>, %arg4: memref<1x384xf32, #tpu.memory_space<vmem>>, %arg5: memref<64x384xf32, #tpu.memory_space<vmem>>) attributes {dimension_semantics = [#tpu.dimension_semantics<parallel>, #tpu.dimension_semantics<parallel>], iteration_bounds = array<i64: 1, 2>, scalar_prefetch = 0 : i64, scratch_operands = 0 : i64, tpu.core_type = #tpu.core_type<tc>, window_params = [{transform_indices = @transform_0, window_bounds = array<i64: 64, 384>}, {transform_indices = @transform_1, window_bounds = array<i64: 1, 384>}, {transform_indices = @transform_2, window_bounds = array<i64: 1, 384>}, {transform_indices = @transform_3, window_bounds = array<i64: 64, 384>}]} {
    %c0 = arith.constant 0 : index
    %c0_0 = arith.constant 0 : index
    %0 = vector.load %arg2[%c0, %c0_0] : memref<64x384xf32, #tpu.memory_space<vmem>>, vector<64x384xf32>
    %c0_1 = arith.constant 0 : index
    %c0_2 = arith.constant 0 : index
    %1 = vector.load %arg3[%c0_1, %c0_2] : memref<1x384xf32, #tpu.memory_space<vmem>>, vector<1x384xf32>
    %2 = vector.broadcast %1 : vector<1x384xf32> to vector<64x384xf32>
    %3 = arith.mulf %0, %2 : vector<64x384xf32>
    %c0_3 = arith.constant 0 : index
    %c0_4 = arith.constant 0 : index
    %4 = vector.load %arg4[%c0_3, %c0_4] : memref<1x384xf32, #tpu.memory_space<vmem>>, vector<1x384xf32>
    %5 = vector.broadcast %4 : vector<1x384xf32> to vector<64x384xf32>
    %6 = arith.addf %3, %5 : vector<64x384xf32>
    %c0_5 = arith.constant 0 : index
    %c0_6 = arith.constant 0 : index
    %7 = vector.load %arg5[%c0_5, %c0_6] : memref<64x384xf32, #tpu.memory_space<vmem>>, vector<64x384xf32>
    tpu.vector_store %arg5[%c0_5, %c0_6], %6 {strides = array<i32>} : memref<64x384xf32, #tpu.memory_space<vmem>>, vector<64x384xf32>,
    return
  }
  func.func @transform_0(%arg0: i32, %arg1: i32) -> (i32, i32) {
    %c0_i32 = arith.constant 0 : i32
    return %arg1, %arg0 : i32, i32
  }
  func.func @transform_1(%arg0: i32, %arg1: i32) -> (i32, i32) {
    %c0_i32 = arith.constant 0 : i32
    %c0_i32_0 = arith.constant 0 : i32
    return %c0_i32, %arg0 : i32, i32
  }
  func.func @transform_2(%arg0: i32, %arg1: i32) -> (i32, i32) {
    %c0_i32 = arith.constant 0 : i32
    %c0_i32_0 = arith.constant 0 : i32
    return %c0_i32, %arg0 : i32, i32
  }
  func.func @transform_3(%arg0: i32, %arg1: i32) -> (i32, i32) {
    %c0_i32 = arith.constant 0 : i32
    return %arg1, %arg0 : i32, i32
  }
}

</mosaic_0001>

<llo_original>
// kernel: tpu_custom_call.1
$region0: #{tpu_custom_call.1}
  #allocation0 [shape = 'u32[]', space=smem, size = 0x4, offset = 0x4, fixed_abs, tag = 'smem constant byte address 0x4 - core index']
  #allocation1 [shape = 'u32[144,128]{1,0:T(1,128)}', space=vmem, size = 0x12000, scoped, tag = 'internal scratch']
  %s0 = inlined_call_operand.hbm [shape: f32[128,384], index: 0, kind: input, shape index: {}]
  %s1 = inlined_call_operand.vmem [shape: f32[1,384], index: 1, kind: input, shape index: {}]
  %s2 = inlined_call_operand.vmem [shape: f32[1,384], index: 2, kind: input, shape index: {}]
  %s3 = inlined_call_operand.hbm [shape: f32[128,384], index: 3, kind: output, shape index: {}]
  %s4 = sld [smem:[#allocation0]]
  $region49: #{tpu_custom_call.1} parent=0
    _
  %s6 = ssub.s32 1, %s4
  %s7 = scalar_select 0, %s6, %s4
  $region1: #{tpu_custom_call.1} parent=0
    #allocation2 [shape = 'u8[196608]{0}', space=vmem, size = 0x30000, scoped, tag = 'input window, operand 0']
    #allocation3 [shape = 's32[2]{0}', space=sflag, size = 0x8, scoped, tag = 'scoped memory for tpu_custom_call.1']
    #allocation4 [shape = 's32[2]{0}', space=sflag, size = 0x8, scoped, tag = 'scoped memory for tpu_custom_call.1']
    #allocation5 [shape = 'u8[196608]{0}', space=vmem, size = 0x30000, scoped, tag = 'output window, operand 0']
    %8 = vsyncpa [#allocation3], 0
    %s9 = scalar_lea.sflag [#allocation3], 1
    %10 = vsyncpa %s9, 0
    %11 = vsyncpa [#allocation4], 0
    %s12 = scalar_lea.sflag [#allocation4], 1
    %13 = vsyncpa %s12, 0
    loop: start=0, step=1, limit=4
    $region2: #{tpu_custom_call.1} parent=1 // loop_pre_header
      _
    $region3: #{tpu_custom_call.1} parent=1 // loop_header
      %s15 = sphi 0, %s19
      %p16 = scmp.ge.s32.totalorder %s15, 4
      %s22 = sphi 0, %s34
      %s23 = sphi 0, %s30
      %s24 = sphi 0, %s22
      %s25 = sphi 0, %s23
      %s26 = sphi 0, %s24
      %s27 = sphi 0, %s25
      %s39 = sphi 0, %s41
      %s42 = sphi 0, %s39
      %s43 = sphi 0, %s42
      %s59 = sphi 0, %s43
      %s65 = sphi 0, %s67
      %s68 = sphi 0, %s65
      %s69 = sphi 0, %s68
      %s85 = sphi 0, %s69
      %s91 = sphi 0, %s93
      %s94 = sphi 0, %s91
      %s95 = sphi 0, %s94
      %s111 = sphi 0, %s95
      %s119 = sphi 0, %s121
      %s122 = sphi 0, %s119
      %s123 = sphi 0, %s122
      %s139 = sphi 0, %s123
    $region4: #{tpu_custom_call.1} parent=1 // loop_header_branch
      %18 = sbr.rel (%p16) target = $region8
    $region5: #{tpu_custom_call.1} parent=1 // loop_body
      %s20 = ssub.s32 %s15, 1
      %s21 = ssub.s32 %s15, 2
      %s28 = sadd.s32 1, %s23
      %p29 = scmp.ge.s32.totalorder %s28, 2
      %s30 = scalar_select %p29, 0, %s28
      %s31 = sadd.s32 1, %s22
      %s32 = scalar_select %p29, %s31, %s22
      %p33 = scmp.ge.s32.totalorder %s32, 1
      %s34 = scalar_select %p33, 0, %s32
      %s35 = ssub.s32 %s23, %s30
      %s36 = ssub.s32 %s22, %s34
      %s37 = sor.u32 %s35, %s36
      %p38 = scmp.eq.s32.totalorder %s37, 0
      %s40 = sadd.s32 %s39, 1
      %s41 = scalar_select %p38, %s39, %s40
      %p44 = pneg %p38
      %p45 = scmp.eq.s32.totalorder %s15, 1
      %p46 = por %p44, %p45
      %p47 = scmp.ne.s32.totalorder %s39, %s42
      %p48 = scmp.eq.s32.totalorder %s15, 0
      %p49 = por %p47, %p48
      %p50 = scmp.ne.s32.totalorder %s39, %s42
      %p51 = scmp.eq.s32.totalorder %s20, 1
      %p52 = por %p50, %p51
      %p53 = scmp.ne.s32.totalorder %s42, %s43
      %p54 = scmp.eq.s32.totalorder %s20, 0
      %p55 = por %p53, %p54
      %p56 = scmp.ne.s32.totalorder %s42, %s43
      %p57 = scmp.eq.s32.totalorder %s21, 1
      %p58 = por %p56, %p57
      %p60 = scmp.ne.s32.totalorder %s43, %s59
      %p61 = scmp.eq.s32.totalorder %s21, 0
      %p62 = por %p60, %p61
      %s63 = ssub.s32 %s22, %s34
      %p64 = scmp.eq.s32.totalorder %s63, 0
      %s66 = sadd.s32 %s65, 1
      %s67 = scalar_select %p64, %s65, %s66
      %p70 = pneg %p64
      %p71 = scmp.eq.s32.totalorder %s15, 1
      %p72 = por %p70, %p71
      %p73 = scmp.ne.s32.totalorder %s65, %s68
      %p74 = scmp.eq.s32.totalorder %s15, 0
      %p75 = por %p73, %p74
      %p76 = scmp.ne.s32.totalorder %s65, %s68
      %p77 = scmp.eq.s32.totalorder %s20, 1
      %p78 = por %p76, %p77
      %p79 = scmp.ne.s32.totalorder %s68, %s69
      %p80 = scmp.eq.s32.totalorder %s20, 0
      %p81 = por %p79, %p80
      %p82 = scmp.ne.s32.totalorder %s68, %s69
      %p83 = scmp.eq.s32.totalorder %s21, 1
      %p84 = por %p82, %p83
      %p86 = scmp.ne.s32.totalorder %s69, %s85
      %p87 = scmp.eq.s32.totalorder %s21, 0
      %p88 = por %p86, %p87
      %s89 = ssub.s32 %s22, %s34
      %p90 = scmp.eq.s32.totalorder %s89, 0
      %s92 = sadd.s32 %s91, 1
      %s93 = scalar_select %p90, %s91, %s92
      %p96 = pneg %p90
      %p97 = scmp.eq.s32.totalorder %s15, 1
      %p98 = por %p96, %p97
      %p99 = scmp.ne.s32.totalorder %s91, %s94
      %p100 = scmp.eq.s32.totalorder %s15, 0
      %p101 = por %p99, %p100
      %p102 = scmp.ne.s32.totalorder %s91, %s94
      %p103 = scmp.eq.s32.totalorder %s20, 1
      %p104 = por %p102, %p103
      %p105 = scmp.ne.s32.totalorder %s94, %s95
      %p106 = scmp.eq.s32.totalorder %s20, 0
      %p107 = por %p105, %p106
      %p108 = scmp.ne.s32.totalorder %s94, %s95
      %p109 = scmp.eq.s32.totalorder %s21, 1
      %p110 = por %p108, %p109
      %p112 = scmp.ne.s32.totalorder %s95, %s111
      %p113 = scmp.eq.s32.totalorder %s21, 0
      %p114 = por %p112, %p113
      %s115 = ssub.s32 %s23, %s30
      %s116 = ssub.s32 %s22, %s34
      %s117 = sor.u32 %s115, %s116
      %p118 = scmp.eq.s32.totalorder %s117, 0
      %s120 = sadd.s32 %s119, 1
      %s121 = scalar_select %p118, %s119, %s120
      %p124 = pneg %p118
      %p125 = scmp.eq.s32.totalorder %s15, 1
      %p126 = por %p124, %p125
      %p127 = scmp.ne.s32.totalorder %s119, %s122
      %p128 = scmp.eq.s32.totalorder %s15, 0
      %p129 = por %p127, %p128
      %p130 = scmp.ne.s32.totalorder %s119, %s122
      %p131 = scmp.eq.s32.totalorder %s20, 1
      %p132 = por %p130, %p131
      %p133 = scmp.ne.s32.totalorder %s122, %s123
      %p134 = scmp.eq.s32.totalorder %s20, 0
      %p135 = por %p133, %p134
      %p136 = scmp.ne.s32.totalorder %s122, %s123
      %p137 = scmp.eq.s32.totalorder %s21, 1
      %p138 = por %p136, %p137
      %p140 = scmp.ne.s32.totalorder %s123, %s139
      %p141 = scmp.eq.s32.totalorder %s21, 0
      %p142 = por %p140, %p141
      %p143 = scmp.le.s32.totalorder 1, %s15
      %p144 = scmp.lt.s32.totalorder %s15, 3
      %p145 = pnand %p143, %p144
      %p146 = pneg %p145
      // Predicated region
      $region9: #{tpu_custom_call.1} parent=5 // pred_check
        _
      $region10: #{tpu_custom_call.1} parent=5 // pred_check_branch
        %148 = sbr.rel (%p145) target = $region12
      $region11: #{tpu_custom_call.1} parent=5 // pred_region
        %s149 = ssub.s32 %s15, 1
        // Predicated region
        $region13: #{tpu_custom_call.1} parent=11 // pred_check
          %p150 = pneg %p81
        $region14: #{tpu_custom_call.1} parent=11 // pred_check_branch
          %152 = sbr.rel (%p150) target = $region16
        $region15: #{tpu_custom_call.1} parent=11 // pred_region
          %s153 = smul.u32 3, %s24
          %p154 = scmp.lt.s32.totalorder %s153, 2
          %s155 = scalar_select %p154, %s153, 2
          %s156 = scalar_lea.vmem %s1, %s155
          %s157 = smul.u32 3, %s24
        $region16: #{tpu_custom_call.1} parent=11 // pred_fallthru
          _
        // Predicated region
        $region17: #{tpu_custom_call.1} parent=11 // pred_check
          %p158 = pneg %p107
        $region18: #{tpu_custom_call.1} parent=11 // pred_check_branch
          %160 = sbr.rel (%p158) target = $region20
        $region19: #{tpu_custom_call.1} parent=11 // pred_region
          %s161 = smul.u32 3, %s24
          %p162 = scmp.lt.s32.totalorder %s161, 2
          %s163 = scalar_select %p162, %s161, 2
          %s164 = scalar_lea.vmem %s2, %s163
          %s165 = smul.u32 3, %s24
        $region20: #{tpu_custom_call.1} parent=11 // pred_fallthru
          _
      $region12: #{tpu_custom_call.1} parent=5 // pred_fallthru
        _
      %p166 = scmp.lt.s32.totalorder %s15, 2
      // Predicated region
      $region21: #{tpu_custom_call.1} parent=5 // pred_check
        %p167 = pneg %p166
      $region22: #{tpu_custom_call.1} parent=5 // pred_check_branch
        %169 = sbr.rel (%p167) target = $region24
      $region23: #{tpu_custom_call.1} parent=5 // pred_region
        // Predicated region
        $region25: #{tpu_custom_call.1} parent=23 // pred_check
          %p170 = pneg %p49
        $region26: #{tpu_custom_call.1} parent=23 // pred_check_branch
          %172 = sbr.rel (%p170) target = $region28
        $region27: #{tpu_custom_call.1} parent=23 // pred_region
          %s173 = sand.u32 %s39, 1
          %s174 = scalar_lea.sflag [#allocation3], %s173
          %s175 = sand.u32 %s39, 1
          %s176 = smul.addr %s175, 192
          %s177 = scalar_lea.vmem [#allocation2], %s176
          %s178 = smul.u32 8, %s23
          %s179 = smul.u32 3, %s22
          %s181 = ssub.s32 3072, 3072
          %182 = vsyncadd %s174, %s181
          %s183 = smul.addr %s178, 3
          %s184 = sadd.s32 %s179, %s183
          %s185 = smul.addr %s184, 128
          %s186 = scalar_lea.hbm %s0, %s185
          %s187 = sshll.u32 %s177, 4
          %s188 = int_to_ptr.vmem [resolvable:$true] %s187
          %193 = dma.hbm_to_vmem [thread:$0]  %s186, 3072, %s188, %s174, 384, 384, 24
        $region28: #{tpu_custom_call.1} parent=23 // pred_fallthru
          _
      $region24: #{tpu_custom_call.1} parent=5 // pred_fallthru
        _
      %p194 = scmp.le.s32.totalorder 1, %s15
      %p195 = scmp.lt.s32.totalorder %s15, 3
      %p196 = pnand %p194, %p195
      %p197 = pneg %p196
      // Predicated region
      $region29: #{tpu_custom_call.1} parent=5 // pred_check
        _
      $region30: #{tpu_custom_call.1} parent=5 // pred_check_branch
        %199 = sbr.rel (%p196) target = $region32
      $region31: #{tpu_custom_call.1} parent=5 // pred_region
        %s200 = ssub.s32 %s15, 1
        %s201 = sand.u32 %s42, 1
        %s202 = scalar_lea.sflag [#allocation3], %s201
        %s203 = sand.u32 %s42, 1
        %s204 = smul.addr %s203, 192
        %s205 = scalar_lea.vmem [#allocation2], %s204
        // Predicated region
        $region33: #{tpu_custom_call.1} parent=31 // pred_check
          %p206 = pneg %p55
        $region34: #{tpu_custom_call.1} parent=31 // pred_check_branch
          %208 = sbr.rel (%p206) target = $region36
        $region35: #{tpu_custom_call.1} parent=31 // pred_region
          %209 = dma.done %s202, 3072
        $region36: #{tpu_custom_call.1} parent=31 // pred_fallthru
          _
        %s210 = sand.u32 %s42, 1
        %s211 = scalar_lea.sflag [#allocation3], %s210
        %s212 = sand.u32 %s42, 1
        %s213 = smul.addr %s212, 192
        %s214 = scalar_lea.vmem [#allocation2], %s213
        %p215 = pneg %p55
        %p216 = pneg %p52
        %s217 = smul.u32 3, %s24
        %p218 = scmp.lt.s32.totalorder %s217, 2
        %s219 = scalar_select %p218, %s217, 2
        %s220 = scalar_lea.vmem %s1, %s219
        %p221 = pneg %p81
        %p222 = pneg %p78
        %s223 = smul.u32 3, %s24
        %p224 = scmp.lt.s32.totalorder %s223, 2
        %s225 = scalar_select %p224, %s223, 2
        %s226 = scalar_lea.vmem %s2, %s225
        %p227 = pneg %p107
        %p228 = pneg %p104
        %p229 = pneg %p135
        %p230 = pneg %p132
        %s231 = sand.u32 %s122, 1
        %s232 = scalar_lea.sflag [#allocation4], %s231
        %s233 = sand.u32 %s122, 1
        %s234 = smul.addr %s233, 192
        %s235 = scalar_lea.vmem [#allocation5], %s234
        %s236 = smul.u32 8, %s25
        %s237 = smul.u32 3, %s24
        %s238 = smul.u32 3, %s24
        %p239 = scmp.lt.s32.totalorder %s238, 2
        %s240 = scalar_select %p239, %s238, 2
        %s241 = scalar_lea.vmem %s1, %s240
        %s242 = smul.u32 3, %s24
        %s243 = smul.u32 3, %s24
        %p244 = scmp.lt.s32.totalorder %s243, 2
        %s245 = scalar_select %p244, %s243, 2
        %s246 = scalar_lea.vmem %s2, %s245
        %s247 = smul.u32 3, %s24
        %s248 = smul.u32 8, %s25
        %s249 = smul.u32 3, %s24
        %v250 = vld [vmem:[%s205] sm:$0xff]
        %v251 = vld [vmem:[%s205 + $0x8] sm:$0xff]
        %v252 = vld [vmem:[%s205 + $0x10] sm:$0xff]
        %v253 = vld [vmem:[%s205 + $0x18] sm:$0xff]
        %v254 = vld [vmem:[%s205 + $0x20] sm:$0xff]
        %v255 = vld [vmem:[%s205 + $0x28] sm:$0xff]
        %v256 = vld [vmem:[%s205 + $0x30] sm:$0xff]
        %v257 = vld [vmem:[%s205 + $0x38] sm:$0xff]
        %v258 = vld [vmem:[%s205 + $0x40] sm:$0xff]
        %v259 = vld [vmem:[%s205 + $0x48] sm:$0xff]
        %v260 = vld [vmem:[%s205 + $0x50] sm:$0xff]
        %v261 = vld [vmem:[%s205 + $0x58] sm:$0xff]
        %v262 = vld [vmem:[%s205 + $0x60] sm:$0xff]
        %v263 = vld [vmem:[%s205 + $0x68] sm:$0xff]
        %v264 = vld [vmem:[%s205 + $0x70] sm:$0xff]
        %v265 = vld [vmem:[%s205 + $0x78] sm:$0xff]
        %v266 = vld [vmem:[%s205 + $0x80] sm:$0xff]
        %v267 = vld [vmem:[%s205 + $0x88] sm:$0xff]
        %v268 = vld [vmem:[%s205 + $0x90] sm:$0xff]
        %v269 = vld [vmem:[%s205 + $0x98] sm:$0xff]
        %v270 = vld [vmem:[%s205 + $0xa0] sm:$0xff]
        %v271 = vld [vmem:[%s205 + $0xa8] sm:$0xff]
        %v272 = vld [vmem:[%s205 + $0xb0] sm:$0xff]
        %v273 = vld [vmem:[%s205 + $0xb8] sm:$0xff]
        %v274 = vld [vmem:[%s241] sm:$0x7]
        %v276 = vlaneseq
        %v277 = vshrl.u32 %v276, 7
        %v278 = vsub.s32 0, %v277
        %v279 = vrot.slane %v274, %v278
        %v280 = vlaneseq
        %v281 = vshrl.u32 %v280, 7
        %v282 = vsub.s32 1, %v281
        %v283 = vrot.slane %v274, %v282
        %v284 = vlaneseq
        %v285 = vshrl.u32 %v284, 7
        %v286 = vsub.s32 2, %v285
        %v287 = vrot.slane %v274, %v286
        %v291 = vmul.f32 %v250, %v279
        %v292 = vmul.f32 %v251, %v283
        %v293 = vmul.f32 %v252, %v287
        %v294 = vmul.f32 %v253, %v279
        %v295 = vmul.f32 %v254, %v283
        %v296 = vmul.f32 %v255, %v287
        %v297 = vmul.f32 %v256, %v279
        %v298 = vmul.f32 %v257, %v283
        %v299 = vmul.f32 %v258, %v287
        %v300 = vmul.f32 %v259, %v279
        %v301 = vmul.f32 %v260, %v283
        %v302 = vmul.f32 %v261, %v287
        %v303 = vmul.f32 %v262, %v279
        %v304 = vmul.f32 %v263, %v283
        %v305 = vmul.f32 %v264, %v287
        %v306 = vmul.f32 %v265, %v279
        %v307 = vmul.f32 %v266, %v283
        %v308 = vmul.f32 %v267, %v287
        %v309 = vmul.f32 %v268, %v279
        %v310 = vmul.f32 %v269, %v283
        %v311 = vmul.f32 %v270, %v287
        %v312 = vmul.f32 %v271, %v279
        %v313 = vmul.f32 %v272, %v283
        %v314 = vmul.f32 %v273, %v287
        %v315 = vld [vmem:[%s246] sm:$0x7]
        %v317 = vlaneseq
        %v318 = vshrl.u32 %v317, 7
        %v319 = vsub.s32 0, %v318
        %v320 = vrot.slane %v315, %v319
        %v321 = vlaneseq
        %v322 = vshrl.u32 %v321, 7
        %v323 = vsub.s32 1, %v322
        %v324 = vrot.slane %v315, %v323
        %v325 = vlaneseq
        %v326 = vshrl.u32 %v325, 7
        %v327 = vsub.s32 2, %v326
        %v328 = vrot.slane %v315, %v327
        %v332 = vadd.f32 %v291, %v320
        %v333 = vadd.f32 %v292, %v324
        %v334 = vadd.f32 %v293, %v328
        %v335 = vadd.f32 %v294, %v320
        %v336 = vadd.f32 %v295, %v324
        %v337 = vadd.f32 %v296, %v328
        %v338 = vadd.f32 %v297, %v320
        %v339 = vadd.f32 %v298, %v324
        %v340 = vadd.f32 %v299, %v328
        %v341 = vadd.f32 %v300, %v320
        %v342 = vadd.f32 %v301, %v324
        %v343 = vadd.f32 %v302, %v328
        %v344 = vadd.f32 %v303, %v320
        %v345 = vadd.f32 %v304, %v324
        %v346 = vadd.f32 %v305, %v328
        %v347 = vadd.f32 %v306, %v320
        %v348 = vadd.f32 %v307, %v324
        %v349 = vadd.f32 %v308, %v328
        %v350 = vadd.f32 %v309, %v320
        %v351 = vadd.f32 %v310, %v324
        %v352 = vadd.f32 %v311, %v328
        %v353 = vadd.f32 %v312, %v320
        %v354 = vadd.f32 %v313, %v324
        %v355 = vadd.f32 %v314, %v328
        %356 = vst [vmem:[%s235] sm:$0xff] %v332
        %357 = vst [vmem:[%s235 + $0x8] sm:$0xff] %v333
        %358 = vst [vmem:[%s235 + $0x10] sm:$0xff] %v334
        %359 = vst [vmem:[%s235 + $0x18] sm:$0xff] %v335
        %360 = vst [vmem:[%s235 + $0x20] sm:$0xff] %v336
        %361 = vst [vmem:[%s235 + $0x28] sm:$0xff] %v337
        %362 = vst [vmem:[%s235 + $0x30] sm:$0xff] %v338
        %363 = vst [vmem:[%s235 + $0x38] sm:$0xff] %v339
        %364 = vst [vmem:[%s235 + $0x40] sm:$0xff] %v340
        %365 = vst [vmem:[%s235 + $0x48] sm:$0xff] %v341
        %366 = vst [vmem:[%s235 + $0x50] sm:$0xff] %v342
        %367 = vst [vmem:[%s235 + $0x58] sm:$0xff] %v343
        %368 = vst [vmem:[%s235 + $0x60] sm:$0xff] %v344
        %369 = vst [vmem:[%s235 + $0x68] sm:$0xff] %v345
        %370 = vst [vmem:[%s235 + $0x70] sm:$0xff] %v346
        %371 = vst [vmem:[%s235 + $0x78] sm:$0xff] %v347
        %372 = vst [vmem:[%s235 + $0x80] sm:$0xff] %v348
        %373 = vst [vmem:[%s235 + $0x88] sm:$0xff] %v349
        %374 = vst [vmem:[%s235 + $0x90] sm:$0xff] %v350
        %375 = vst [vmem:[%s235 + $0x98] sm:$0xff] %v351
        %376 = vst [vmem:[%s235 + $0xa0] sm:$0xff] %v352
        %377 = vst [vmem:[%s235 + $0xa8] sm:$0xff] %v353
        %378 = vst [vmem:[%s235 + $0xb0] sm:$0xff] %v354
        %379 = vst [vmem:[%s235 + $0xb8] sm:$0xff] %v355
        %s380 = sand.u32 %s122, 1
        %s381 = scalar_lea.sflag [#allocation4], %s380
        %s382 = sand.u32 %s122, 1
        %s383 = smul.addr %s382, 192
        %s384 = scalar_lea.vmem [#allocation5], %s383
        // Predicated region
        $region37: #{tpu_custom_call.1} parent=31 // pred_check
          %p385 = pneg %p132
        $region38: #{tpu_custom_call.1} parent=31 // pred_check_branch
          %387 = sbr.rel (%p385) target = $region40
        $region39: #{tpu_custom_call.1} parent=31 // pred_region
          %s388 = smul.u32 8, %s25
          %s389 = smul.u32 3, %s24
          %s391 = ssub.s32 3072, 3072
          %392 = vsyncadd %s381, %s391
          %s393 = smul.addr %s388, 3
          %s394 = sadd.s32 %s389, %s393
          %s395 = smul.addr %s394, 128
          %s396 = scalar_lea.hbm %s3, %s395
          %s397 = sshll.u32 %s384, 4
          %s398 = int_to_ptr.vmem [resolvable:$true] %s397
          %403 = dma.vmem_to_hbm [thread:$0]  %s398, 3072, %s396, %s381, 384, 384, 24
        $region40: #{tpu_custom_call.1} parent=31 // pred_fallthru
          _
      $region32: #{tpu_custom_call.1} parent=5 // pred_fallthru
        _
      %p404 = scmp.le.s32.totalorder 2, %s15
      // Predicated region
      $region41: #{tpu_custom_call.1} parent=5 // pred_check
        %p405 = pneg %p404
      $region42: #{tpu_custom_call.1} parent=5 // pred_check_branch
        %407 = sbr.rel (%p405) target = $region44
      $region43: #{tpu_custom_call.1} parent=5 // pred_region
        %s408 = ssub.s32 %s15, 2
        // Predicated region
        $region45: #{tpu_custom_call.1} parent=43 // pred_check
          %p409 = pneg %p138
        $region46: #{tpu_custom_call.1} parent=43 // pred_check_branch
          %411 = sbr.rel (%p409) target = $region48
        $region47: #{tpu_custom_call.1} parent=43 // pred_region
          %s412 = sand.u32 %s123, 1
          %s413 = scalar_lea.sflag [#allocation4], %s412
          %s414 = sand.u32 %s123, 1
          %s415 = smul.addr %s414, 192
          %s416 = scalar_lea.vmem [#allocation5], %s415
          %417 = dma.done %s413, 3072
        $region48: #{tpu_custom_call.1} parent=43 // pred_fallthru
          _
      $region44: #{tpu_custom_call.1} parent=5 // pred_fallthru
        _
    $region6: #{tpu_custom_call.1} parent=1 // loop_footer
      %s19 = sadd.s32 1, %s15
    $region7: #{tpu_custom_call.1} parent=1 // loop_footer_branch
      %14 = sbr.rel target = $region3
    $region8: #{tpu_custom_call.1} parent=1 // loop_exit
      _
    %418 = vsyncpa [#allocation3], 1
    %s419 = scalar_lea.sflag [#allocation3], 1
    %420 = vsyncpa %s419, 1
    %421 = vsyncpa [#allocation4], 1
    %s422 = scalar_lea.sflag [#allocation4], 1
    %423 = vsyncpa %s422, 1

</llo_original>
